<compile_context>
chip_gen: v6e
topology: v6e:2x2x1
jax: 0.10.0
libtpu: 0.0.40
codegen_flags: <defaults>
</compile_context>

<pallas_src>
import math
from functools import partial

import jax
import jax.numpy as jnp
from jax.experimental import pallas as pl
from jax.experimental.pallas import tpu as pltpu

_SQRT_2_OVER_PI = math.sqrt(2.0 / math.pi)
_MAX_LANE_WIDTH = 4096  # cap for the lane-dense slab width (multiple of 128)


def _tpu_generation() -> int:
    try:
        kind = jax.devices()[0].device_kind.lower()
    except Exception:
        return 0
    for g in (7, 6, 5, 4):
        if f"v{g}" in kind:
            return g
    return 0


def _default_block_bytes(gen: int) -> int:
    # v6e: 128 MiB physical VMEM -> afford larger slabs (85% -> ~86% roofline).
    # v7x: 64 MiB physical / 32 MiB scoped default -> keep ~4 MiB blocks.
    # v5e: 16 MiB scoped default -> 2 MiB blocks keep 2 refs x 2 bufs well inside.
    if gen >= 7:
        return 4 * 1024 * 1024
    if gen == 6:
        return 6 * 1024 * 1024
    return 2 * 1024 * 1024


def _compute_dtype_for(dtype, gen: int):
    # bf16 math halves vreg pressure and keeps the single-slot EUP tanh off the
    # critical path on v6e/v7x; v5e's VPU/EUP have no bf16, so stay in f32.
    # TODO(synk): for bf16 inputs on v5e (f32-upcast path) verify via a bundle
    # dump whether the lone f32 EUP tanh slot saturates before HBM; if so, swap
    # in a VALU-side minimax tanh for that path only.
    if dtype == jnp.bfloat16 and gen >= 6:
        return jnp.bfloat16
    return jnp.float32


def _gelu_math(x):
    # Python-float constants are weakly typed -> computation stays in x.dtype.
    return 0.5 * x * (1.0 + jnp.tanh(_SQRT_2_OVER_PI * (x + 0.044715 * (x * x * x))))


def _gelu_kernel(x_ref, o_ref, *, compute_dtype):
    x = x_ref[...].astype(compute_dtype)
    o_ref[...] = _gelu_math(x).astype(o_ref.dtype)


def _pick_lane_width(total: int) -> int:
    """Largest multiple-of-128 divisor of `total` that is <= _MAX_LANE_WIDTH."""
    best = 128
    for w in range(128, _MAX_LANE_WIDTH + 1, 128):
        if total % w == 0:
            best = w
    return best


def _choose_row_tile(rows: int, cols: int, itemsize: int, block_bytes: int, gen: int) -> int:
    bytes_per_row = max(1, cols * itemsize)
    # VMEM-budget tile (multiple of 8 sublanes).
    rt = max(8, (int(block_bytes // bytes_per_row) // 8) * 8)
    if rt >= rows:
        rt = rows
    if gen >= 7:
        # Two TensorCores share the parallel axis: aim for >=8 (even) steps so
        # each core keeps >=4 double-buffered blocks in flight.
        target_steps, floor_bytes = 8, 512 * 1024
    else:
        # Single TC: extra steps only buy DMA overlap; never shrink blocks
        # below ~1 MiB (the 29-63%-of-roofline regime).
        target_steps, floor_bytes = 4, 1024 * 1024
    floor_rows = max(8, (int(floor_bytes // bytes_per_row) // 8) * 8)
    steps = -(-rows // rt)
    if steps < target_steps:
        want_rt = max(8, ((-(-rows // target_steps) + 7) // 8) * 8)
        want_rt = max(want_rt, floor_rows)
        rt = min(rt, want_rt)
    elif gen >= 7 and steps % 2:
        # Nudge toward an even step count so the two TensorCores stay balanced.
        want_rt = max(8, ((-(-rows // (steps + 1)) + 7) // 8) * 8)
        rt = min(rt, want_rt)
    return max(1, min(rt, rows))


def _run_2d(x2: jax.Array, row_tile: int, compute_dtype) -> jax.Array:
    rows, cols = x2.shape
    itemsize = jnp.dtype(x2.dtype).itemsize
    grid = (pl.cdiv(rows, row_tile),)
    tile_bytes = row_tile * cols * itemsize
    # in + out refs, each double-buffered, plus headroom; explicit so v5e's
    # 16 MiB scoped default never silently degrades pipelining.
    vmem_limit = int(min(max(5 * tile_bytes, 8 * 1024 * 1024), 100 * 1024 * 1024))
    n = rows * cols
    cost = pl.CostEstimate(
        flops=8 * n, transcendentals=n, bytes_accessed=2 * n * itemsize
    )
    return pl.pallas_call(
        partial(_gelu_kernel, compute_dtype=compute_dtype),
        out_shape=jax.ShapeDtypeStruct((rows, cols), x2.dtype),
        grid_spec=pltpu.PrefetchScalarGridSpec(
            num_scalar_prefetch=0,
            grid=grid,
            in_specs=[pl.BlockSpec((row_tile, cols), lambda i: (i, 0))],
            out_specs=pl.BlockSpec((row_tile, cols), lambda i: (i, 0)),
        ),
        compiler_params=pltpu.CompilerParams(
            dimension_semantics=("parallel",),
            vmem_limit_bytes=vmem_limit,
        ),
        cost_estimate=cost,
    )(x2)


def gelu_pallas(x: jax.Array, *, block_bytes: int | None = None) -> jax.Array:
    """Elementwise tanh-GELU via a Pallas TPU kernel. Works for any shape."""
    orig_shape = x.shape
    total = int(x.size)
    if total == 0:
        return x
    itemsize = jnp.dtype(x.dtype).itemsize
    gen = _tpu_generation()
    if block_bytes is None:
        block_bytes = _default_block_bytes(gen)
    compute_dtype = _compute_dtype_for(x.dtype, gen)

    # Common path: flatten into a wide, lane-dense (multiple-of-128) slab.
    if total % 128 == 0:
        w = _pick_lane_width(total)
        x2 = x.reshape(-1, w)
        rt = _choose_row_tile(x2.shape[0], w, itemsize, block_bytes, gen)
        return _run_2d(x2, rt, compute_dtype).reshape(orig_shape)

    # Ragged totals (no multiple-of-128 factorization possible).
    last = int(orig_shape[-1]) if x.ndim >= 1 else 1

    if total * itemsize <= block_bytes:
        # Small tensor: one full-array block (block == full dims is always
        # legal), no padding and no extra copies.
        x2 = x.reshape(-1, last) if x.ndim >= 2 else x.reshape(1, total)
        return _run_2d(x2, x2.shape[0], compute_dtype).reshape(orig_shape)

    if x.ndim >= 2 and last >= 128 and last * itemsize * 8 <= block_bytes:
        # Natural 2D view: full (ragged) last dim on the lanes. Partial-lane
        # stores are masked, but there is zero extra HBM traffic.
        x2 = x.reshape(-1, last)
        rt = _choose_row_tile(x2.shape[0], last, itemsize, block_bytes, gen)
        return _run_2d(x2, rt, compute_dtype).reshape(orig_shape)

    # Rare: large tensor with a tiny trailing dim and non-128-divisible total.
    # Kernel on the 128-divisible prefix, plain XLA on the <128-element tail
    # (avoids the whole-array pad + slice round trip).
    flat = x.reshape(-1)
    main = (total // 128) * 128
    w = _pick_lane_width(main)
    xm = flat[:main].reshape(-1, w)
    rt = _choose_row_tile(xm.shape[0], w, itemsize, block_bytes, gen)
    out_main = _run_2d(xm, rt, compute_dtype).reshape(-1)
    tail = flat[main:].astype(compute_dtype)
    out_tail = _gelu_math(tail).astype(x.dtype)
    return jnp.concatenate([out_main, out_tail]).reshape(orig_shape)


def gelu_ref(x: jax.Array) -> jax.Array:
    xf = x.astype(jnp.float32)
    y = 0.5 * xf * (1.0 + jnp.tanh(_SQRT_2_OVER_PI * (xf + 0.044715 * xf ** 3)))
    return y.astype(x.dtype)


if __name__ == "__main__":
    key = jax.random.PRNGKey(0)
    k1, k2, k3, k4 = jax.random.split(key, 4)

    # 1) LLM-style activation (batch=2, seq=8, hidden=128), f32, lane-dense path.
    x1 = jax.random.normal(k1, (2, 8, 128), dtype=jnp.float32)
    y1 = jax.block_until_ready(gelu_pallas(x1))
    assert y1.shape == x1.shape and y1.dtype == x1.dtype
    assert jnp.allclose(y1, gelu_ref(x1), atol=1e-5, rtol=1e-5), "f32 mismatch"

    # 2) Awkward shape (total not divisible by 128): single full-block ragged path.
    x2 = jax.random.normal(k2, (5, 7, 96), dtype=jnp.float32)
    y2 = jax.block_until_ready(gelu_pallas(x2))
    assert y2.shape == x2.shape and y2.dtype == x2.dtype
    assert jnp.allclose(y2, gelu_ref(x2), atol=1e-5, rtol=1e-5), "ragged mismatch"

    # 3) bf16 path (bf16 compute on v6e/v7x, f32 compute elsewhere).
    x3 = jax.random.normal(k3, (4, 16, 128), dtype=jnp.bfloat16)
    y3 = jax.block_until_ready(gelu_pallas(x3))
    assert y3.shape == x3.shape and y3.dtype == x3.dtype
    assert jnp.allclose(
        y3.astype(jnp.float32), gelu_ref(x3).astype(jnp.float32),
        atol=3e-2, rtol=3e-2,
    ), "bf16 mismatch"

    # 4) Force multi-step tiling with a partial (masked) last block via a small
    #    block budget, to exercise the pipelined grid path at small scale.
    x4 = jax.random.normal(k4, (33, 8, 128), dtype=jnp.float32)
    y4 = jax.block_until_ready(gelu_pallas(x4, block_bytes=96 * 1024))
    assert y4.shape == x4.shape and y4.dtype == x4.dtype
    assert jnp.allclose(y4, gelu_ref(x4), atol=1e-5, rtol=1e-5), "tiled mismatch"

    print("KERNEL_OK")
</pallas_src>

<mosaic_0001>
module attributes {stable_mosaic.version = 11 : i64} {
  func.func @_gelu_kernel(%arg0: i32, %arg1: memref<1x2048xf32, #tpu.memory_space<vmem>>, %arg2: memref<1x2048xf32, #tpu.memory_space<vmem>>) attributes {dimension_semantics = [#tpu.dimension_semantics<parallel>], iteration_bounds = array<i64: 1>, scalar_prefetch = 0 : i64, scratch_operands = 0 : i64, tpu.core_type = #tpu.core_type<tc>, window_params = [{transform_indices = @transform_0, window_bounds = array<i64: 1, 2048>}, {transform_indices = @transform_1, window_bounds = array<i64: 1, 2048>}]} {
    %c0 = arith.constant 0 : index
    %c0_0 = arith.constant 0 : index
    %0 = vector.load %arg1[%c0, %c0_0] : memref<1x2048xf32, #tpu.memory_space<vmem>>, vector<1x2048xf32>
    %cst = arith.constant 5.000000e-01 : f32
    %1 = vector.broadcast %cst : f32 to vector<1x2048xf32>
    %2 = arith.mulf %1, %0 : vector<1x2048xf32>
    %3 = arith.mulf %0, %0 : vector<1x2048xf32>
    %4 = arith.mulf %3, %0 : vector<1x2048xf32>
    %cst_1 = arith.constant 4.471500e-02 : f32
    %5 = vector.broadcast %cst_1 : f32 to vector<1x2048xf32>
    %6 = arith.mulf %5, %4 : vector<1x2048xf32>
    %7 = arith.addf %0, %6 : vector<1x2048xf32>
    %cst_2 = arith.constant 0.797884583 : f32
    %8 = vector.broadcast %cst_2 : f32 to vector<1x2048xf32>
    %9 = arith.mulf %8, %7 : vector<1x2048xf32>
    %10 = math.tanh %9 : vector<1x2048xf32>
    %cst_3 = arith.constant 1.000000e+00 : f32
    %11 = vector.broadcast %cst_3 : f32 to vector<1x2048xf32>
    %12 = arith.addf %11, %10 : vector<1x2048xf32>
    %13 = arith.mulf %2, %12 : vector<1x2048xf32>
    %c0_4 = arith.constant 0 : index
    %c0_5 = arith.constant 0 : index
    %14 = vector.load %arg2[%c0_4, %c0_5] : memref<1x2048xf32, #tpu.memory_space<vmem>>, vector<1x2048xf32>
    tpu.vector_store %arg2[%c0_4, %c0_5], %13 {strides = array<i32>} : memref<1x2048xf32, #tpu.memory_space<vmem>>, vector<1x2048xf32>,
    return
  }
  func.func @transform_0(%arg0: i32) -> (i32, i32) {
    %c0_i32 = arith.constant 0 : i32
    %c0_i32_0 = arith.constant 0 : i32
    return %arg0, %c0_i32 : i32, i32
  }
  func.func @transform_1(%arg0: i32) -> (i32, i32) {
    %c0_i32 = arith.constant 0 : i32
    %c0_i32_0 = arith.constant 0 : i32
    return %arg0, %c0_i32 : i32, i32
  }
}

</mosaic_0001>

<llo_original>
// kernel: tpu_custom_call.1
$region0: #{tpu_custom_call.1}
  #allocation0 [shape = 'u32[]', space=smem, size = 0x4, offset = 0x4, fixed_abs, tag = 'smem constant byte address 0x4 - core index']
  #allocation1 [shape = 'u32[144,128]{1,0:T(1,128)}', space=vmem, size = 0x12000, scoped, tag = 'internal scratch']
  %s0 = inlined_call_operand.hbm [shape: f32[1,2048], index: 0, kind: input, shape index: {}]
  %s1 = inlined_call_operand.hbm [shape: f32[1,2048], index: 1, kind: output, shape index: {}]
  %s2 = sld [smem:[#allocation0]]
  $region18: #{tpu_custom_call.1} parent=0
    _
  %s4 = ssub.s32 1, %s2
  %s5 = scalar_select 0, %s4, %s2
  $region1: #{tpu_custom_call.1} parent=0
    #allocation2 [shape = 'u8[8192]{0}', space=vmem, size = 0x2000, scoped, tag = 'input window, operand 0, single buffered']
    #allocation3 [shape = 's32[1]{0}', space=sflag, size = 0x4, scoped, tag = 'scoped memory for tpu_custom_call.1']
    #allocation4 [shape = 's32[1]{0}', space=sflag, size = 0x4, scoped, tag = 'scoped memory for tpu_custom_call.1']
    #allocation5 [shape = 'u8[8192]{0}', space=vmem, size = 0x2000, scoped, tag = 'output window, operand 0, single buffered']
    %6 = vsyncpa [#allocation3], 0
    %7 = vsyncpa [#allocation4], 0
    // Predicated region
    $region2: #{tpu_custom_call.1} parent=1 // pred_check
      _
    $region3: #{tpu_custom_call.1} parent=1 // pred_check_branch
      %9 = sbr.rel (0) target = $region5
    $region4: #{tpu_custom_call.1} parent=1 // pred_region
      %s11 = ssub.s32 256, 256
      %12 = vsyncadd [#allocation3], %s11
      %s14 = sshll.u32 [#allocation2], 4
      %s15 = int_to_ptr.vmem [resolvable:$true] %s14
      %17 = dma.hbm_to_vmem [thread:$0]  %s0, 256, %s15, [#allocation3]
    $region5: #{tpu_custom_call.1} parent=1 // pred_fallthru
      _
    // Predicated region
    $region6: #{tpu_custom_call.1} parent=1 // pred_check
      _
    $region7: #{tpu_custom_call.1} parent=1 // pred_check_branch
      %19 = sbr.rel (0) target = $region9
    $region8: #{tpu_custom_call.1} parent=1 // pred_region
      %20 = dma.done [#allocation3], 256
    $region9: #{tpu_custom_call.1} parent=1 // pred_fallthru
      _
    %v21 = vld [vmem:[#allocation2] sm:$0xff]
    %v22 = vld [vmem:[#allocation2 + $0x8] sm:$0xff]
    %v23 = vmul.f32 %v21, 0.5
    %v24 = vmul.f32 %v22, 0.5
    %v25 = vmul.f32 %v21, %v21
    %v26 = vmul.f32 %v22, %v22
    %v27 = vmul.f32 %v25, %v21
    %v28 = vmul.f32 %v26, %v22
    %v29 = vmul.f32 %v27, 0.044715
    %v30 = vmul.f32 %v28, 0.044715
    %v31 = vadd.f32 %v21, %v29
    %v32 = vadd.f32 %v22, %v30
    %v33 = vmul.f32 %v31, 0.7978846
    %v34 = vmul.f32 %v32, 0.7978846
    %v35 = vtanh.pop %v33
    %v36 = vtanh.pop %v34
    %v37 = vadd.f32 %v35, 1.0
    %v38 = vadd.f32 %v36, 1.0
    %v39 = vmul.f32 %v23, %v37
    %v40 = vmul.f32 %v24, %v38
    %41 = vst [vmem:[#allocation5] sm:$0xff] %v39
    %42 = vst [vmem:[#allocation5 + $0x8] sm:$0xff] %v40
    // Predicated region
    $region10: #{tpu_custom_call.1} parent=1 // pred_check
      _
    $region11: #{tpu_custom_call.1} parent=1 // pred_check_branch
      %44 = sbr.rel (0) target = $region13
    $region12: #{tpu_custom_call.1} parent=1 // pred_region
      %s46 = ssub.s32 256, 256
      %47 = vsyncadd [#allocation4], %s46
      %s49 = sshll.u32 [#allocation5], 4
      %s50 = int_to_ptr.vmem [resolvable:$true] %s49
      %52 = dma.vmem_to_hbm [thread:$0]  %s50, 256, %s1, [#allocation4]
    $region13: #{tpu_custom_call.1} parent=1 // pred_fallthru
      _
    // Predicated region
    $region14: #{tpu_custom_call.1} parent=1 // pred_check
      _
    $region15: #{tpu_custom_call.1} parent=1 // pred_check_branch
      %54 = sbr.rel (0) target = $region17
    $region16: #{tpu_custom_call.1} parent=1 // pred_region
      %55 = dma.done [#allocation4], 256
    $region17: #{tpu_custom_call.1} parent=1 // pred_fallthru
      _
    %56 = vsyncpa [#allocation3], 1
    %57 = vsyncpa [#allocation4], 1

</llo_original>
